<compile_context>
chip_gen: v6e
topology: v6e:2x2x1
jax: 0.10.0
libtpu: 0.0.40
codegen_flags: <defaults>
</compile_context>

<pallas_src>
import functools

import jax
import jax.numpy as jnp
from jax.experimental import pallas as pl
from jax.experimental.pallas import tpu as pltpu


def _ramp_math(x):
    # hardtanh(x, -0.5, 0.5) == clip(x, -0.5, 0.5); then 0.5 * (. + 1)
    return 0.5 * (jnp.clip(x, -0.5, 0.5) + 1.0)


def _ramp_kernel(x_ref, o_ref):
    o_ref[...] = _ramp_math(x_ref[...])


_MIN_PALLAS_ELEMS = 1024      # below one (8,128) f32 tile, launch overhead dominates
_MAX_WD = 8192                # widest lane dim considered (long unmasked vst)
_MIB = 1024 * 1024


def _sublane_pack(dtype) -> int:
    itemsize = jnp.dtype(dtype).itemsize
    return {4: 8, 2: 16, 1: 32}.get(itemsize, 8)


def _cdiv(a, b):
    return -(-a // b)


def _align_up(a, m):
    return _cdiv(a, m) * m


@functools.lru_cache(maxsize=1)
def _chip_params():
    """Chip-aware (target block bytes, VMEM limit cap, multi-TensorCore?)."""
    kind = ""
    try:
        kind = (getattr(jax.devices()[0], "device_kind", "") or "").lower()
    except Exception:
        pass
    if "v7" in kind:
        # 64 MiB VMEM/TC, 2 TCs/chip: ~10 MiB blocks keep 4x residency < 64 MiB.
        return 10 * _MIB, 56 * _MIB, True
    if "v6" in kind:
        # 128 MiB VMEM, 1 TC: go big; per-step overhead amortizes fully.
        return 16 * _MIB, 100 * _MIB, False
    if "v4" in kind or "v5p" in kind:
        # Megacore chips (2 TCs): large blocks + balanced grid.
        return 16 * _MIB, 100 * _MIB, True
    if "v5" in kind:
        # v5e: lowest HBM BW, 8 MiB blocks are already near roofline.
        return 8 * _MIB, 100 * _MIB, False
    # Unknown backend (e.g. interpret mode): conservative defaults.
    return 8 * _MIB, 48 * _MIB, False


def _pick_lane_width(n, sublane):
    """Largest multiple-of-128 divisor of n (<= _MAX_WD), preferring >= one
    sublane pack of rows so blocks are well shaped."""
    largest = None
    for cand in range(min(_MAX_WD, n), 127, -128):
        if n % cand == 0:
            if largest is None:
                largest = cand
            if (n // cand) >= sublane:
                return cand
    return largest if largest is not None else 128


def _pick_row_tile(rows, wd, itemsize, sublane, block_bytes, multi_tc):
    """Rows per block: as large as the chip budget allows; on multi-TC chips
    balance the grid (even number of near-equal blocks, or >= 8 steps)."""
    cap = max(sublane, (block_bytes // (wd * itemsize)) // sublane * sublane)
    if rows <= cap:
        if multi_tc and rows >= 2 * sublane:
            # Two near-equal sublane-aligned blocks so both TensorCores get work.
            return min(_align_up(_cdiv(rows, 2), sublane), rows)
        # Single full-dim block (always a legal block shape); no artificial
        # split on single-TC chips — the grid is a sequential loop there.
        return rows
    n_steps = _cdiv(rows, cap)
    if multi_tc and n_steps < 8 and n_steps % 2 == 1:
        # Odd step count would make one TC do an extra block; round up to even.
        n_steps += 1
        return max(sublane, min(_align_up(_cdiv(rows, n_steps), sublane), cap))
    return cap


@jax.jit
def myact_ramp(x: jax.Array) -> jax.Array:
    """0.5 * (hardtanh(x, -0.5, 0.5) + 1), element-wise, via a Pallas TPU kernel."""
    n = x.size
    # Fallback: tiny inputs, or sizes not a multiple of 128 lanes. A fused XLA
    # elementwise op is a single HBM pass — cheaper than pad + kernel + slice.
    if n < _MIN_PALLAS_ELEMS or n % 128 != 0:
        return _ramp_math(x)

    itemsize = jnp.dtype(x.dtype).itemsize
    sublane = _sublane_pack(x.dtype)          # 8 (f32) / 16 (bf16) / 32 (i8)
    block_bytes, vmem_cap, multi_tc = _chip_params()

    wd = _pick_lane_width(n, sublane)
    rows = n // wd
    tr = _pick_row_tile(rows, wd, itemsize, sublane, block_bytes, multi_tc)
    grid = _cdiv(rows, tr)                    # ragged tail = masked partial block

    # In + out, double-buffered -> ~4x block resident; add headroom, cap per chip.
    vmem_limit = int(min(vmem_cap, max(32 * _MIB, 4 * tr * wd * itemsize + 8 * _MIB)))

    x2d = x.reshape(rows, wd)                 # contiguous reshape: metadata only

    out2d = pl.pallas_call(
        _ramp_kernel,
        out_shape=jax.ShapeDtypeStruct((rows, wd), x.dtype),
        grid_spec=pltpu.PrefetchScalarGridSpec(
            num_scalar_prefetch=0,
            grid=(grid,),
            # Default double-buffering; no pl.Buffered(3) — deeper buffering
            # adds no bandwidth for a streaming elementwise kernel.
            in_specs=[pl.BlockSpec((tr, wd), lambda i: (i, 0))],
            out_specs=pl.BlockSpec((tr, wd), lambda i: (i, 0)),
        ),
        compiler_params=pltpu.CompilerParams(
            # "parallel" lets the runtime shard the row axis across TensorCores
            # on megacore/v7x parts.
            # TODO(synk): verify on v7x hardware that this shards across both
            # TCs; if not, switch to pltpu.CORE_PARALLEL / pl.core_map.
            dimension_semantics=("parallel",),
            vmem_limit_bytes=vmem_limit,
        ),
    )(x2d)

    return out2d.reshape(x.shape)


if __name__ == "__main__":
    key = jax.random.PRNGKey(0)
    k1, k2, k3 = jax.random.split(key, 3)

    # Small NCHW shape consistent with a conv-net activation (single block path).
    x_small = jax.random.normal(k1, (2, 4, 16, 16), dtype=jnp.float32)
    y_small = jax.block_until_ready(myact_ramp(x_small))
    assert y_small.shape == x_small.shape
    assert jnp.allclose(y_small, _ramp_math(x_small), atol=1e-6), "small mismatch"

    # Larger input: (147, 8192) slab — single big block on v5e/v6e, balanced
    # 2-step split on multi-TC chips (exercises the ragged/partial-block path).
    x_big = jax.random.normal(k2, (8, 48, 56, 56), dtype=jnp.float32)
    y_big = jax.block_until_ready(myact_ramp(x_big))
    assert jnp.allclose(y_big, _ramp_math(x_big), atol=1e-6), "big mismatch"

    # bf16 input exercises the dtype-aware (16, 128) sublane handling.
    x_bf16 = jax.random.normal(k3, (2, 8, 32, 32), dtype=jnp.bfloat16)
    y_bf16 = jax.block_until_ready(myact_ramp(x_bf16))
    assert y_bf16.dtype == jnp.bfloat16
    assert jnp.allclose(y_bf16.astype(jnp.float32),
                        _ramp_math(x_bf16.astype(jnp.float32)), atol=1e-2), "bf16 mismatch"

    print("KERNEL_OK")
</pallas_src>

<mosaic_0001>
module attributes {stable_mosaic.version = 11 : i64} {
  func.func @_ramp_kernel(%arg0: i32, %arg1: memref<8x256xf32, #tpu.memory_space<vmem>>, %arg2: memref<8x256xf32, #tpu.memory_space<vmem>>) attributes {dimension_semantics = [#tpu.dimension_semantics<parallel>], iteration_bounds = array<i64: 1>, scalar_prefetch = 0 : i64, scratch_operands = 0 : i64, tpu.core_type = #tpu.core_type<tc>, window_params = [{transform_indices = @transform_0, window_bounds = array<i64: 8, 256>}, {transform_indices = @transform_1, window_bounds = array<i64: 8, 256>}]} {
    %c0 = arith.constant 0 : index
    %c0_0 = arith.constant 0 : index
    %0 = vector.load %arg1[%c0, %c0_0] : memref<8x256xf32, #tpu.memory_space<vmem>>, vector<8x256xf32>
    %cst = arith.constant -5.000000e-01 : f32
    %cst_1 = arith.constant 5.000000e-01 : f32
    %1 = vector.broadcast %cst : f32 to vector<8x256xf32>
    %2 = arith.maximumf %1, %0 : vector<8x256xf32>
    %3 = vector.broadcast %cst_1 : f32 to vector<8x256xf32>
    %4 = arith.minimumf %3, %2 : vector<8x256xf32>
    %cst_2 = arith.constant 1.000000e+00 : f32
    %5 = vector.broadcast %cst_2 : f32 to vector<8x256xf32>
    %6 = arith.addf %4, %5 : vector<8x256xf32>
    %cst_3 = arith.constant 5.000000e-01 : f32
    %7 = vector.broadcast %cst_3 : f32 to vector<8x256xf32>
    %8 = arith.mulf %7, %6 : vector<8x256xf32>
    %c0_4 = arith.constant 0 : index
    %c0_5 = arith.constant 0 : index
    %9 = vector.load %arg2[%c0_4, %c0_5] : memref<8x256xf32, #tpu.memory_space<vmem>>, vector<8x256xf32>
    tpu.vector_store %arg2[%c0_4, %c0_5], %8 {strides = array<i32>} : memref<8x256xf32, #tpu.memory_space<vmem>>, vector<8x256xf32>,
    return
  }
  func.func @transform_0(%arg0: i32) -> (i32, i32) {
    %c0_i32 = arith.constant 0 : i32
    %c0_i32_0 = arith.constant 0 : i32
    return %arg0, %c0_i32 : i32, i32
  }
  func.func @transform_1(%arg0: i32) -> (i32, i32) {
    %c0_i32 = arith.constant 0 : i32
    %c0_i32_0 = arith.constant 0 : i32
    return %arg0, %c0_i32 : i32, i32
  }
}

</mosaic_0001>

<llo_original>
// kernel: myact_ramp.1
$region0: #{myact_ramp.1}
  #allocation0 [shape = 'u32[]', space=smem, size = 0x4, offset = 0x4, fixed_abs, tag = 'smem constant byte address 0x4 - core index']
  #allocation1 [shape = 'u32[144,128]{1,0:T(1,128)}', space=vmem, size = 0x12000, scoped, tag = 'internal scratch']
  %s0 = inlined_call_operand.vmem [shape: f32[8,256], index: 0, kind: input, shape index: {}]
  %s1 = inlined_call_operand.vmem [shape: f32[8,256], index: 1, kind: output, shape index: {}]
  %s2 = sld [smem:[#allocation0]]
  $region14: #{myact_ramp.1} parent=0
    _
  %s4 = ssub.s32 1, %s2
  %s5 = scalar_select 0, %s4, %s2
  // Predicated region
  $region2: #{myact_ramp.1} parent=0 // pred_check
    _
  $region3: #{myact_ramp.1} parent=0 // pred_check_branch
    %7 = sbr.rel (0) target = $region5
  $region4: #{myact_ramp.1} parent=0 // pred_region
    _
  $region5: #{myact_ramp.1} parent=0 // pred_fallthru
    _
  %v8 = vld [vmem:[%s0] sm:$0xff]
  %v9 = vld [vmem:[%s0 + $0x8] sm:$0xff]
  %v10 = vmax.f32 %v8, -0.5
  %v11 = vmax.f32 %v9, -0.5
  %v12 = vmin.f32 %v10, 0.5
  %v13 = vmin.f32 %v11, 0.5
  %v14 = vadd.f32 %v12, 1.0
  %v15 = vadd.f32 %v13, 1.0
  %v16 = vmul.f32 %v14, 0.5
  %v17 = vmul.f32 %v15, 0.5
  %18 = vst [vmem:[%s1] sm:$0xff] %v16
  %19 = vst [vmem:[%s1 + $0x8] sm:$0xff] %v17
  // Predicated region
  $region6: #{myact_ramp.1} parent=0 // pred_check
    _
  $region7: #{myact_ramp.1} parent=0 // pred_check_branch
    %21 = sbr.rel (0) target = $region9
  $region8: #{myact_ramp.1} parent=0 // pred_region
    _
  $region9: #{myact_ramp.1} parent=0 // pred_fallthru
    _
  // Predicated region
  $region10: #{myact_ramp.1} parent=0 // pred_check
    _
  $region11: #{myact_ramp.1} parent=0 // pred_check_branch
    %23 = sbr.rel (0) target = $region13
  $region12: #{myact_ramp.1} parent=0 // pred_region
    _
  $region13: #{myact_ramp.1} parent=0 // pred_fallthru
    _

</llo_original>
